<compile_context>
chip_gen: v6e
topology: v6e:2x2x1
jax: 0.10.0
libtpu: 0.0.40
codegen_flags: <defaults>
</compile_context>

<pallas_src>
from functools import partial

import jax
import jax.numpy as jnp
from jax.experimental import pallas as pl
from jax.experimental.pallas import tpu as pltpu


def gated_conv1d_kernel(x_ref, lh_ref, rh_ref, w_ref, b_ref, o_ref, *, c_out, mxu_dtype):
    # x_ref : (1, C_in, TL)       current L-tile of the input (NCL, native dtype)
    # lh_ref: (1, 1, C_in, 1)     left-halo column  (x[:, :, l*TL-1],   zeros for tile 0)
    # rh_ref: (1, 1, C_in, 1)     right-halo column (x[:, :, (l+1)*TL], zeros for last tile)
    # w_ref : (K, 2*C_out, C_in)  fused weights, tap-major; rows = [conv1; conv2]
    # b_ref : (2*C_out, 1)        fused bias (f32)
    # o_ref : (1, C_out, TL)      output tile, lane-dense in L
    x0 = x_ref[0].astype(mxu_dtype)                     # in-kernel cast (no extra HBM pass)
    c_in, tl = x0.shape
    left = lh_ref[0, 0].astype(mxu_dtype)               # (C_in, 1)
    right = rh_ref[0, 0].astype(mxu_dtype)              # (C_in, 1)

    lane = jax.lax.broadcasted_iota(jnp.int32, (c_in, tl), 1)

    # tap k=0 (input position t-1): rotate right by 1 (XLU), fix column 0 from the halo.
    x_km1 = jnp.where(lane == 0, left, pltpu.roll(x0, shift=1, axis=1))
    # tap k=2 (input position t+1): rotate left by 1, fix the last column from the halo.
    x_kp1 = jnp.where(lane == tl - 1, right, pltpu.roll(x0, shift=tl - 1, axis=1))

    # Three accumulated MXU matmuls (both gates fused along rows), f32 accumulation.
    acc = jnp.dot(w_ref[0], x_km1, preferred_element_type=jnp.float32)
    acc = acc + jnp.dot(w_ref[1], x0, preferred_element_type=jnp.float32)
    acc = acc + jnp.dot(w_ref[2], x_kp1, preferred_element_type=jnp.float32)
    acc = acc + b_ref[...]

    a = acc[:c_out, :]
    g = acc[c_out:, :]
    o_ref[0] = (a * jax.nn.sigmoid(g)).astype(o_ref.dtype)


def _vmem_capacity_bytes():
    try:
        return int(pltpu.get_tpu_info().vmem_capacity_bytes)
    except Exception:
        return 64 * 1024 * 1024  # conservative default (v7x per-TC physical VMEM)


def _step_footprint_bytes(tl, c_in, c_out, x_bytes, out_bytes, mxu_bytes):
    # Double-buffered HBM<->VMEM streams + in-kernel temporaries (shifted copies, f32 acc).
    stream = 2 * c_in * tl * x_bytes + 2 * c_out * tl * out_bytes
    temps = 3 * c_in * tl * max(mxu_bytes, x_bytes) + 3 * c_out * tl * 4
    return stream + temps


def _choose_l_tile(L, c_in, c_out, x_bytes, out_bytes, mxu_bytes, budget_bytes, max_tl=2048):
    """Largest 128-aligned L tile that divides L, is <= max_tl, and fits the per-step budget."""
    if L % 128 != 0:
        return L  # ragged L: single block (caller validates it fits the VMEM limit)
    best = 128
    t = 128
    limit = min(L, max_tl)
    while t <= limit:
        if L % t == 0 and _step_footprint_bytes(t, c_in, c_out, x_bytes, out_bytes, mxu_bytes) <= budget_bytes:
            best = t
        t += 128
    return best


def gated_convolution(x, w1, b1, w2, b2, *, mxu_dtype=jnp.bfloat16, l_tile=None):
    """x: (N, C_in, L); w*: (C_out, C_in, K=3); b*: (C_out,). Returns (N, C_out, L) in x.dtype."""
    N, C_in, L = x.shape
    C_out, _, K = w1.shape
    assert K == 3 and w2.shape == w1.shape, "module hard-codes padding=1 => K must be 3"

    x_bytes = jnp.dtype(x.dtype).itemsize
    out_bytes = x_bytes
    mxu_bytes = jnp.dtype(mxu_dtype).itemsize

    # Generation-aware VMEM budgets (v7x: 64 MiB per TC; v5e/v6e: 128 MiB physical).
    vmem_cap = _vmem_capacity_bytes()
    vmem_limit = int(min(vmem_cap // 2, 64 * 1024 * 1024))     # 32 MiB on v7x, 64 MiB on v5e/v6e
    tile_budget = int(min(vmem_cap // 3, 24 * 1024 * 1024))    # double-buffered per-step target

    if l_tile is None:
        TL = _choose_l_tile(L, C_in, C_out, x_bytes, out_bytes, mxu_bytes, tile_budget)
    else:
        TL = l_tile
    assert L % TL == 0 and (TL == L or TL % 128 == 0), "L tile must divide L and be 128-aligned"
    step_bytes = _step_footprint_bytes(TL, C_in, C_out, x_bytes, out_bytes, mxu_bytes)
    if step_bytes > vmem_limit:
        raise ValueError(
            f"GatedConvolution tile TL={TL} needs ~{step_bytes >> 20} MiB of VMEM per step but the "
            f"limit is {vmem_limit >> 20} MiB; pad L to a multiple of 128 or pass a smaller l_tile.")
    num_l = L // TL

    # Fused weights, tap-major: w_fused[k] = [conv1 tap k; conv2 tap k] -> (K, 2*C_out, C_in).
    w_cat = jnp.concatenate([w1, w2], axis=0)                    # (2*C_out, C_in, K)
    w_mxu = jnp.transpose(w_cat, (2, 0, 1)).astype(mxu_dtype)    # (K, 2*C_out, C_in)
    b_cat = jnp.concatenate([b1, b2], axis=0).reshape(2 * C_out, 1).astype(jnp.float32)

    # Tiny halo-column side inputs (one column per tile): avoids re-reading x 3x.
    #   left_halo[n, l]  = x[n, :, l*TL - 1]   (zeros for l == 0)
    #   right_halo[n, l] = x[n, :, (l+1)*TL]   (zeros for l == num_l - 1)
    tile_last = x[:, :, TL - 1::TL]      # (N, C_in, num_l)
    tile_first = x[:, :, 0::TL]          # (N, C_in, num_l)
    zcol = jnp.zeros((N, C_in, 1), x.dtype)
    left_halo = jnp.concatenate([zcol, tile_last[:, :, : num_l - 1]], axis=2)
    right_halo = jnp.concatenate([tile_first[:, :, 1:], zcol], axis=2)
    left_halo = jnp.transpose(left_halo, (0, 2, 1))[..., None]    # (N, num_l, C_in, 1)
    right_halo = jnp.transpose(right_halo, (0, 2, 1))[..., None]  # (N, num_l, C_in, 1)

    # Put the bigger parallel axis first so v7x's two TensorCores split the grid evenly.
    swap = num_l > N
    grid = (num_l, N) if swap else (N, num_l)

    def _nl(i, j):
        return (j, i) if swap else (i, j)

    def x_index(i, j):
        n, l = _nl(i, j)
        return (n, 0, l)

    def halo_index(i, j):
        n, l = _nl(i, j)
        return (n, l, 0, 0)

    def out_index(i, j):
        n, l = _nl(i, j)
        return (n, 0, l)

    cost = pl.CostEstimate(
        flops=int(2 * N * L * (K * C_in) * (2 * C_out) + 4 * N * L * C_out),
        transcendentals=int(N * L * C_out),
        bytes_accessed=int(x.size * x_bytes + N * C_out * L * out_bytes
                           + w_mxu.size * mxu_bytes + b_cat.size * 4
                           + 2 * N * num_l * C_in * x_bytes),
    )

    out = pl.pallas_call(
        partial(gated_conv1d_kernel, c_out=C_out, mxu_dtype=mxu_dtype),
        out_shape=jax.ShapeDtypeStruct((N, C_out, L), x.dtype),
        grid_spec=pltpu.PrefetchScalarGridSpec(
            num_scalar_prefetch=0,
            grid=grid,
            in_specs=[
                pl.BlockSpec((1, C_in, TL), x_index),                        # input tile (read once)
                pl.BlockSpec((1, 1, C_in, 1), halo_index),                   # left-halo column
                pl.BlockSpec((1, 1, C_in, 1), halo_index),                   # right-halo column
                pl.BlockSpec((K, 2 * C_out, C_in), lambda i, j: (0, 0, 0)),  # resident weights
                pl.BlockSpec((2 * C_out, 1), lambda i, j: (0, 0)),           # resident bias
            ],
            out_specs=pl.BlockSpec((1, C_out, TL), out_index),
        ),
        compiler_params=pltpu.CompilerParams(
            dimension_semantics=("parallel", "parallel"),
            vmem_limit_bytes=vmem_limit,
        ),
        cost_estimate=cost,
    )(x, left_halo, right_halo, w_mxu, b_cat)

    return out


# ---------------- deterministic parameter init (mirrors the PyTorch __init__) ----------------

def xavier_uniform(key, c_out, c_in, k):
    fan_in = c_in * k
    fan_out = c_out * k
    bound = (6.0 / (fan_in + fan_out)) ** 0.5
    return jax.random.uniform(key, (c_out, c_in, k), jnp.float32, -bound, bound)


def conv_bias_default(key, c_out, c_in, k):
    # PyTorch Conv1d default bias init: U(-1/sqrt(fan_in), 1/sqrt(fan_in))
    bound = 1.0 / (c_in * k) ** 0.5
    return jax.random.uniform(key, (c_out,), jnp.float32, -bound, bound)


def ref_forward(x, w1, b1, w2, b2):
    """Pure-JAX reference of the PyTorch forward (NCL layout)."""
    N, C_in, L = x.shape
    K = w1.shape[2]
    xp = jnp.pad(x, ((0, 0), (0, 0), (1, 1)))
    windows = jnp.stack([xp[:, :, k:k + L] for k in range(K)], axis=-1)     # (N, C_in, L, K)
    hi = jax.lax.Precision.HIGHEST
    a = jnp.einsum('nclk,ock->nol', windows, w1, precision=hi) + b1[None, :, None]
    g = jnp.einsum('nclk,ock->nol', windows, w2, precision=hi) + b2[None, :, None]
    return a * jax.nn.sigmoid(g)


if __name__ == "__main__":
    N, C_in, C_out, L, K = 2, 8, 16, 256, 3

    key = jax.random.PRNGKey(0)
    kx, kw1, kw2, kb1, kb2 = jax.random.split(key, 5)

    x = jax.random.normal(kx, (N, C_in, L), jnp.float32)
    w1 = xavier_uniform(kw1, C_out, C_in, K)
    w2 = xavier_uniform(kw2, C_out, C_in, K)
    b1 = conv_bias_default(kb1, C_out, C_in, K)
    b2 = conv_bias_default(kb2, C_out, C_in, K)

    ref = ref_forward(x, w1, b1, w2, b2)

    # f32 MXU path with explicit L tiling (exercises the cross-tile halo columns).
    out_f32 = jax.block_until_ready(
        gated_convolution(x, w1, b1, w2, b2, mxu_dtype=jnp.float32, l_tile=128))
    assert out_f32.shape == (N, C_out, L)
    assert jnp.allclose(out_f32, ref, atol=2e-3, rtol=2e-3), "f32 tiled path mismatch vs reference"

    # bf16 MXU path with explicit L tiling (default production operand dtype on v6e/v7x).
    out_bf16 = jax.block_until_ready(
        gated_convolution(x, w1, b1, w2, b2, mxu_dtype=jnp.bfloat16, l_tile=128))
    assert out_bf16.shape == (N, C_out, L)
    assert jnp.allclose(out_bf16, ref, atol=5e-2, rtol=5e-2), "bf16 tiled path mismatch vs reference"

    # Auto tile selection (generation-aware budget; here collapses to a single L tile).
    out_auto = jax.block_until_ready(
        gated_convolution(x, w1, b1, w2, b2, mxu_dtype=jnp.float32))
    assert out_auto.shape == (N, C_out, L)
    assert jnp.allclose(out_auto, ref, atol=2e-3, rtol=2e-3), "auto-tile path mismatch vs reference"

    print("KERNEL_OK")
</pallas_src>

<mosaic_0001>
module attributes {stable_mosaic.version = 11 : i64} {
  func.func @gated_conv1d_kernel(%arg0: i32, %arg1: i32, %arg2: memref<1x8x128xf32, #tpu.memory_space<vmem>>, %arg3: memref<1x1x8x1xf32, #tpu.memory_space<vmem>>, %arg4: memref<1x1x8x1xf32, #tpu.memory_space<vmem>>, %arg5: memref<3x32x8xf32, #tpu.memory_space<vmem>>, %arg6: memref<32x1xf32, #tpu.memory_space<vmem>>, %arg7: memref<1x16x128xf32, #tpu.memory_space<vmem>>) attributes {dimension_semantics = [#tpu.dimension_semantics<parallel>, #tpu.dimension_semantics<parallel>], iteration_bounds = array<i64: 2, 2>, scalar_prefetch = 0 : i64, scratch_operands = 0 : i64, tpu.core_type = #tpu.core_type<tc>, window_params = [{transform_indices = @transform_0, window_bounds = array<i64: 1, 8, 128>}, {transform_indices = @transform_1, window_bounds = array<i64: 1, 1, 8, 1>}, {transform_indices = @transform_2, window_bounds = array<i64: 1, 1, 8, 1>}, {pipeline_mode = #tpu.pipeline_mode<synchronous>, transform_indices = @transform_3, window_bounds = array<i64: 3, 32, 8>}, {pipeline_mode = #tpu.pipeline_mode<synchronous>, transform_indices = @transform_4, window_bounds = array<i64: 32, 1>}, {transform_indices = @transform_5, window_bounds = array<i64: 1, 16, 128>}]} {
    %c0 = arith.constant 0 : index
    %c0_0 = arith.constant 0 : index
    %c0_1 = arith.constant 0 : index
    %0 = vector.load %arg2[%c0, %c0_0, %c0_1] : memref<1x8x128xf32, #tpu.memory_space<vmem>>, vector<1x8x128xf32>
    %1 = vector.shape_cast %0 : vector<1x8x128xf32> to vector<8x128xf32>
    %c0_2 = arith.constant 0 : index
    %c0_3 = arith.constant 0 : index
    %c0_4 = arith.constant 0 : index
    %c0_5 = arith.constant 0 : index
    %2 = vector.load %arg3[%c0_2, %c0_3, %c0_4, %c0_5] : memref<1x1x8x1xf32, #tpu.memory_space<vmem>>, vector<1x1x8x1xf32>
    %3 = vector.shape_cast %2 : vector<1x1x8x1xf32> to vector<8x1xf32>
    %c0_6 = arith.constant 0 : index
    %c0_7 = arith.constant 0 : index
    %c0_8 = arith.constant 0 : index
    %c0_9 = arith.constant 0 : index
    %4 = vector.load %arg4[%c0_6, %c0_7, %c0_8, %c0_9] : memref<1x1x8x1xf32, #tpu.memory_space<vmem>>, vector<1x1x8x1xf32>
    %5 = vector.shape_cast %4 : vector<1x1x8x1xf32> to vector<8x1xf32>
    %6 = tpu.iota {dimensions = array<i32: 1>} : vector<8x128xi32>
    %c0_i32 = arith.constant 0 : i32
    %7 = vector.broadcast %c0_i32 : i32 to vector<8x128xi32>
    %8 = arith.cmpi eq, %6, %7 : vector<8x128xi32>
    %c1_i32 = arith.constant 1 : i32
    %9 = tpu.dynamic_rotate %1 by %c1_i32 dim 1 : vector<8x128xf32>, i32 -> vector<8x128xf32>
    %10 = vector.shape_cast %3 : vector<8x1xf32> to vector<8x1xf32>
    %11 = vector.broadcast %10 : vector<8x1xf32> to vector<8x128xf32>
    %12 = arith.select %8, %11, %9 : vector<8x128xi1>, vector<8x128xf32>
    %c127_i32 = arith.constant 127 : i32
    %13 = vector.broadcast %c127_i32 : i32 to vector<8x128xi32>
    %14 = arith.cmpi eq, %6, %13 : vector<8x128xi32>
    %c127_i32_10 = arith.constant 127 : i32
    %15 = tpu.dynamic_rotate %1 by %c127_i32_10 dim 1 : vector<8x128xf32>, i32 -> vector<8x128xf32>
    %16 = vector.shape_cast %5 : vector<8x1xf32> to vector<8x1xf32>
    %17 = vector.broadcast %16 : vector<8x1xf32> to vector<8x128xf32>
    %18 = arith.select %14, %17, %15 : vector<8x128xi1>, vector<8x128xf32>
    %c0_11 = arith.constant 0 : index
    %c0_12 = arith.constant 0 : index
    %c0_13 = arith.constant 0 : index
    %19 = vector.load %arg5[%c0_11, %c0_12, %c0_13] : memref<3x32x8xf32, #tpu.memory_space<vmem>>, vector<1x32x8xf32>
    %20 = vector.shape_cast %19 : vector<1x32x8xf32> to vector<32x8xf32>
    %cst = arith.constant dense<0.000000e+00> : vector<32x128xf32>
    %21 = tpu.matmul %20, %12, %cst {dimension_numbers = #tpu.dot_dimension_numbers<[1], [0], [0], [1], [0, 0, 1, 1], [], []>} : vector<32x8xf32>, vector<8x128xf32>, vector<32x128xf32> -> vector<32x128xf32>
    %c1 = arith.constant 1 : index
    %c0_14 = arith.constant 0 : index
    %c0_15 = arith.constant 0 : index
    %22 = vector.load %arg5[%c1, %c0_14, %c0_15] : memref<3x32x8xf32, #tpu.memory_space<vmem>>, vector<1x32x8xf32>
    %23 = vector.shape_cast %22 : vector<1x32x8xf32> to vector<32x8xf32>
    %cst_16 = arith.constant dense<0.000000e+00> : vector<32x128xf32>
    %24 = tpu.matmul %23, %1, %cst_16 {dimension_numbers = #tpu.dot_dimension_numbers<[1], [0], [0], [1], [0, 0, 1, 1], [], []>} : vector<32x8xf32>, vector<8x128xf32>, vector<32x128xf32> -> vector<32x128xf32>
    %25 = arith.addf %21, %24 : vector<32x128xf32>
    %c2 = arith.constant 2 : index
    %c0_17 = arith.constant 0 : index
    %c0_18 = arith.constant 0 : index
    %26 = vector.load %arg5[%c2, %c0_17, %c0_18] : memref<3x32x8xf32, #tpu.memory_space<vmem>>, vector<1x32x8xf32>
    %27 = vector.shape_cast %26 : vector<1x32x8xf32> to vector<32x8xf32>
    %cst_19 = arith.constant dense<0.000000e+00> : vector<32x128xf32>
    %28 = tpu.matmul %27, %18, %cst_19 {dimension_numbers = #tpu.dot_dimension_numbers<[1], [0], [0], [1], [0, 0, 1, 1], [], []>} : vector<32x8xf32>, vector<8x128xf32>, vector<32x128xf32> -> vector<32x128xf32>
    %29 = arith.addf %25, %28 : vector<32x128xf32>
    %c0_20 = arith.constant 0 : index
    %c0_21 = arith.constant 0 : index
    %30 = vector.load %arg6[%c0_20, %c0_21] : memref<32x1xf32, #tpu.memory_space<vmem>>, vector<32x1xf32>
    %31 = vector.broadcast %30 : vector<32x1xf32> to vector<32x128xf32>
    %32 = arith.addf %29, %31 : vector<32x128xf32>
    %33 = vector.extract_strided_slice %32 {offsets = [0, 0], sizes = [16, 128], strides = [1, 1]} : vector<32x128xf32> to vector<16x128xf32>
    %34 = vector.extract_strided_slice %32 {offsets = [16, 0], sizes = [16, 128], strides = [1, 1]} : vector<32x128xf32> to vector<16x128xf32>
    %35 = arith.negf %34 : vector<16x128xf32>
    %36 = math.exp %35 : vector<16x128xf32>
    %cst_22 = arith.constant 1.000000e+00 : f32
    %37 = vector.broadcast %cst_22 : f32 to vector<16x128xf32>
    %38 = arith.addf %37, %36 : vector<16x128xf32>
    %39 = arith.divf %37, %38 : vector<16x128xf32>
    %40 = arith.mulf %33, %39 : vector<16x128xf32>
    %c0_23 = arith.constant 0 : index
    %c0_24 = arith.constant 0 : index
    %c0_25 = arith.constant 0 : index
    %41 = vector.load %arg7[%c0_23, %c0_24, %c0_25] : memref<1x16x128xf32, #tpu.memory_space<vmem>>, vector<1x16x128xf32>
    %42 = vector.shape_cast %41 : vector<1x16x128xf32> to vector<16x128xf32>
    %43 = vector.shape_cast %40 : vector<16x128xf32> to vector<1x16x128xf32>
    tpu.vector_store %arg7[%c0_23, %c0_24, %c0_25], %43 {strides = array<i32>} : memref<1x16x128xf32, #tpu.memory_space<vmem>>, vector<1x16x128xf32>,
    return
  }
  func.func @transform_0(%arg0: i32, %arg1: i32) -> (i32, i32, i32) {
    %c0_i32 = arith.constant 0 : i32
    %c0_i32_0 = arith.constant 0 : i32
    return %arg0, %c0_i32, %arg1 : i32, i32, i32
  }
  func.func @transform_1(%arg0: i32, %arg1: i32) -> (i32, i32, i32, i32) {
    %c0_i32 = arith.constant 0 : i32
    %c0_i32_0 = arith.constant 0 : i32
    %c0_i32_1 = arith.constant 0 : i32
    return %arg0, %arg1, %c0_i32, %c0_i32_0 : i32, i32, i32, i32
  }
  func.func @transform_2(%arg0: i32, %arg1: i32) -> (i32, i32, i32, i32) {
    %c0_i32 = arith.constant 0 : i32
    %c0_i32_0 = arith.constant 0 : i32
    %c0_i32_1 = arith.constant 0 : i32
    return %arg0, %arg1, %c0_i32, %c0_i32_0 : i32, i32, i32, i32
  }
  func.func @transform_3(%arg0: i32, %arg1: i32) -> (i32, i32, i32) {
    %c0_i32 = arith.constant 0 : i32
    %c0_i32_0 = arith.constant 0 : i32
    %c0_i32_1 = arith.constant 0 : i32
    %c0_i32_2 = arith.constant 0 : i32
    return %c0_i32, %c0_i32_0, %c0_i32_1 : i32, i32, i32
  }
  func.func @transform_4(%arg0: i32, %arg1: i32) -> (i32, i32) {
    %c0_i32 = arith.constant 0 : i32
    %c0_i32_0 = arith.constant 0 : i32
    %c0_i32_1 = arith.constant 0 : i32
    return %c0_i32, %c0_i32_0 : i32, i32
  }
  func.func @transform_5(%arg0: i32, %arg1: i32) -> (i32, i32, i32) {
    %c0_i32 = arith.constant 0 : i32
    %c0_i32_0 = arith.constant 0 : i32
    return %arg0, %c0_i32, %arg1 : i32, i32, i32
  }
}

</mosaic_0001>

<llo_original>
// kernel: tpu_custom_call.1
$region0: #{tpu_custom_call.1}
  #allocation0 [shape = 'u32[]', space=smem, size = 0x4, offset = 0x4, fixed_abs, tag = 'smem constant byte address 0x4 - core index']
  #allocation1 [shape = 'u32[144,128]{1,0:T(1,128)}', space=vmem, size = 0x12000, scoped, tag = 'internal scratch']
  %s0 = inlined_call_operand.vmem [shape: f32[2,8,256], index: 0, kind: input, shape index: {}]
  %s1 = inlined_call_operand.vmem [shape: f32[2,2,8,1], index: 1, kind: input, shape index: {}]
  %s2 = inlined_call_operand.vmem [shape: f32[2,2,8,1], index: 2, kind: input, shape index: {}]
  %s3 = inlined_call_operand.vmem [shape: f32[3,32,8], index: 3, kind: input, shape index: {}]
  %s4 = inlined_call_operand.vmem [shape: f32[32,1], index: 4, kind: input, shape index: {}]
  %s5 = inlined_call_operand.hbm [shape: f32[2,16,256], index: 5, kind: output, shape index: {}]
  %s6 = sld [smem:[#allocation0]]
  $region53: #{tpu_custom_call.1} parent=0
    _
  %s8 = ssub.s32 1, %s6
  %s9 = scalar_select 0, %s8, %s6
  $region1: #{tpu_custom_call.1} parent=0
    #allocation2 [shape = 'u8[16384]{0}', space=vmem, size = 0x4000, scoped, tag = 'output window, operand 0']
    #allocation3 [shape = 's32[2]{0}', space=sflag, size = 0x8, scoped, tag = 'scoped memory for tpu_custom_call.1']
    %10 = vsyncpa [#allocation3], 0
    %s11 = scalar_lea.sflag [#allocation3], 1
    %12 = vsyncpa %s11, 0
    loop: start=0, step=1, limit=6
    $region2: #{tpu_custom_call.1} parent=1 // loop_pre_header
      _
    $region3: #{tpu_custom_call.1} parent=1 // loop_header
      %s14 = sphi 0, %s18
      %p15 = scmp.ge.s32.totalorder %s14, 6
      %s21 = sphi 0, %s33
      %s22 = sphi 0, %s29
      %s23 = sphi 0, %s21
      %s24 = sphi 0, %s22
      %s25 = sphi 0, %s23
      %s26 = sphi 0, %s24
      %s38 = sphi 0, %s40
      %s41 = sphi 0, %s38
      %s42 = sphi 0, %s41
      %s58 = sphi 0, %s42
      %s66 = sphi 0, %s68
      %s69 = sphi 0, %s66
      %s70 = sphi 0, %s69
      %s86 = sphi 0, %s70
      %s94 = sphi 0, %s96
      %s97 = sphi 0, %s94
      %s98 = sphi 0, %s97
      %s114 = sphi 0, %s98
      %s118 = sphi 0, %s118
      %s120 = sphi 0, %s118
      %s121 = sphi 0, %s120
      %s135 = sphi 0, %s121
      %s139 = sphi 0, %s139
      %s141 = sphi 0, %s139
      %s142 = sphi 0, %s141
      %s156 = sphi 0, %s142
      %s164 = sphi 0, %s166
      %s167 = sphi 0, %s164
      %s168 = sphi 0, %s167
      %s184 = sphi 0, %s168
    $region4: #{tpu_custom_call.1} parent=1 // loop_header_branch
      %17 = sbr.rel (%p15) target = $region8
    $region5: #{tpu_custom_call.1} parent=1 // loop_body
      %s19 = ssub.s32 %s14, 1
      %s20 = ssub.s32 %s14, 2
      %s27 = sadd.s32 1, %s22
      %p28 = scmp.ge.s32.totalorder %s27, 2
      %s29 = scalar_select %p28, 0, %s27
      %s30 = sadd.s32 1, %s21
      %s31 = scalar_select %p28, %s30, %s21
      %p32 = scmp.ge.s32.totalorder %s31, 2
      %s33 = scalar_select %p32, 0, %s31
      %s34 = ssub.s32 %s21, %s33
      %s35 = ssub.s32 %s22, %s29
      %s36 = sor.u32 %s34, %s35
      %p37 = scmp.eq.s32.totalorder %s36, 0
      %s39 = sadd.s32 %s38, 1
      %s40 = scalar_select %p37, %s38, %s39
      %p43 = pneg %p37
      %p44 = scmp.eq.s32.totalorder %s14, 3
      %p45 = por %p43, %p44
      %p46 = scmp.ne.s32.totalorder %s38, %s41
      %p47 = scmp.eq.s32.totalorder %s14, 0
      %p48 = por %p46, %p47
      %p49 = scmp.ne.s32.totalorder %s38, %s41
      %p50 = scmp.eq.s32.totalorder %s19, 3
      %p51 = por %p49, %p50
      %p52 = scmp.ne.s32.totalorder %s41, %s42
      %p53 = scmp.eq.s32.totalorder %s19, 0
      %p54 = por %p52, %p53
      %p55 = scmp.ne.s32.totalorder %s41, %s42
      %p56 = scmp.eq.s32.totalorder %s20, 3
      %p57 = por %p55, %p56
      %p59 = scmp.ne.s32.totalorder %s42, %s58
      %p60 = scmp.eq.s32.totalorder %s20, 0
      %p61 = por %p59, %p60
      %s62 = ssub.s32 %s21, %s33
      %s63 = ssub.s32 %s22, %s29
      %s64 = sor.u32 %s62, %s63
      %p65 = scmp.eq.s32.totalorder %s64, 0
      %s67 = sadd.s32 %s66, 1
      %s68 = scalar_select %p65, %s66, %s67
      %p71 = pneg %p65
      %p72 = scmp.eq.s32.totalorder %s14, 3
      %p73 = por %p71, %p72
      %p74 = scmp.ne.s32.totalorder %s66, %s69
      %p75 = scmp.eq.s32.totalorder %s14, 0
      %p76 = por %p74, %p75
      %p77 = scmp.ne.s32.totalorder %s66, %s69
      %p78 = scmp.eq.s32.totalorder %s19, 3
      %p79 = por %p77, %p78
      %p80 = scmp.ne.s32.totalorder %s69, %s70
      %p81 = scmp.eq.s32.totalorder %s19, 0
      %p82 = por %p80, %p81
      %p83 = scmp.ne.s32.totalorder %s69, %s70
      %p84 = scmp.eq.s32.totalorder %s20, 3
      %p85 = por %p83, %p84
      %p87 = scmp.ne.s32.totalorder %s70, %s86
      %p88 = scmp.eq.s32.totalorder %s20, 0
      %p89 = por %p87, %p88
      %s90 = ssub.s32 %s21, %s33
      %s91 = ssub.s32 %s22, %s29
      %s92 = sor.u32 %s90, %s91
      %p93 = scmp.eq.s32.totalorder %s92, 0
      %s95 = sadd.s32 %s94, 1
      %s96 = scalar_select %p93, %s94, %s95
      %p99 = pneg %p93
      %p100 = scmp.eq.s32.totalorder %s14, 3
      %p101 = por %p99, %p100
      %p102 = scmp.ne.s32.totalorder %s94, %s97
      %p103 = scmp.eq.s32.totalorder %s14, 0
      %p104 = por %p102, %p103
      %p105 = scmp.ne.s32.totalorder %s94, %s97
      %p106 = scmp.eq.s32.totalorder %s19, 3
      %p107 = por %p105, %p106
      %p108 = scmp.ne.s32.totalorder %s97, %s98
      %p109 = scmp.eq.s32.totalorder %s19, 0
      %p110 = por %p108, %p109
      %p111 = scmp.ne.s32.totalorder %s97, %s98
      %p112 = scmp.eq.s32.totalorder %s20, 3
      %p113 = por %p111, %p112
      %p115 = scmp.ne.s32.totalorder %s98, %s114
      %p116 = scmp.eq.s32.totalorder %s20, 0
      %p117 = por %p115, %p116
      %s119 = sadd.s32 %s118, 1
      %p122 = scmp.eq.s32.totalorder %s14, 3
      %p123 = scmp.ne.s32.totalorder %s118, %s120
      %p124 = scmp.eq.s32.totalorder %s14, 0
      %p125 = por %p123, %p124
      %p126 = scmp.ne.s32.totalorder %s118, %s120
      %p127 = scmp.eq.s32.totalorder %s19, 3
      %p128 = por %p126, %p127
      %p129 = scmp.ne.s32.totalorder %s120, %s121
      %p130 = scmp.eq.s32.totalorder %s19, 0
      %p131 = por %p129, %p130
      %p132 = scmp.ne.s32.totalorder %s120, %s121
      %p133 = scmp.eq.s32.totalorder %s20, 3
      %p134 = por %p132, %p133
      %p136 = scmp.ne.s32.totalorder %s121, %s135
      %p137 = scmp.eq.s32.totalorder %s20, 0
      %p138 = por %p136, %p137
      %s140 = sadd.s32 %s139, 1
      %p143 = scmp.eq.s32.totalorder %s14, 3
      %p144 = scmp.ne.s32.totalorder %s139, %s141
      %p145 = scmp.eq.s32.totalorder %s14, 0
      %p146 = por %p144, %p145
      %p147 = scmp.ne.s32.totalorder %s139, %s141
      %p148 = scmp.eq.s32.totalorder %s19, 3
      %p149 = por %p147, %p148
      %p150 = scmp.ne.s32.totalorder %s141, %s142
      %p151 = scmp.eq.s32.totalorder %s19, 0
      %p152 = por %p150, %p151
      %p153 = scmp.ne.s32.totalorder %s141, %s142
      %p154 = scmp.eq.s32.totalorder %s20, 3
      %p155 = por %p153, %p154
      %p157 = scmp.ne.s32.totalorder %s142, %s156
      %p158 = scmp.eq.s32.totalorder %s20, 0
      %p159 = por %p157, %p158
      %s160 = ssub.s32 %s21, %s33
      %s161 = ssub.s32 %s22, %s29
      %s162 = sor.u32 %s160, %s161
      %p163 = scmp.eq.s32.totalorder %s162, 0
      %s165 = sadd.s32 %s164, 1
      %s166 = scalar_select %p163, %s164, %s165
      %p169 = pneg %p163
      %p170 = scmp.eq.s32.totalorder %s14, 3
      %p171 = por %p169, %p170
      %p172 = scmp.ne.s32.totalorder %s164, %s167
      %p173 = scmp.eq.s32.totalorder %s14, 0
      %p174 = por %p172, %p173
      %p175 = scmp.ne.s32.totalorder %s164, %s167
      %p176 = scmp.eq.s32.totalorder %s19, 3
      %p177 = por %p175, %p176
      %p178 = scmp.ne.s32.totalorder %s167, %s168
      %p179 = scmp.eq.s32.totalorder %s19, 0
      %p180 = por %p178, %p179
      %p181 = scmp.ne.s32.totalorder %s167, %s168
      %p182 = scmp.eq.s32.totalorder %s20, 3
      %p183 = por %p181, %p182
      %p185 = scmp.ne.s32.totalorder %s168, %s184
      %p186 = scmp.eq.s32.totalorder %s20, 0
      %p187 = por %p185, %p186
      %p188 = scmp.le.s32.totalorder 1, %s14
      %p189 = scmp.lt.s32.totalorder %s14, 5
      %p190 = pnand %p188, %p189
      %p191 = pneg %p190
      // Predicated region
      $region9: #{tpu_custom_call.1} parent=5 // pred_check
        _
      $region10: #{tpu_custom_call.1} parent=5 // pred_check_branch
        %193 = sbr.rel (%p190) target = $region12
      $region11: #{tpu_custom_call.1} parent=5 // pred_region
        %s194 = ssub.s32 %s14, 1
        // Predicated region
        $region13: #{tpu_custom_call.1} parent=11 // pred_check
          %p195 = pneg %p131
        $region14: #{tpu_custom_call.1} parent=11 // pred_check_branch
          %197 = sbr.rel (%p195) target = $region16
        $region15: #{tpu_custom_call.1} parent=11 // pred_region
          _
        $region16: #{tpu_custom_call.1} parent=11 // pred_fallthru
          _
        // Predicated region
        $region17: #{tpu_custom_call.1} parent=11 // pred_check
          %p198 = pneg %p152
        $region18: #{tpu_custom_call.1} parent=11 // pred_check_branch
          %200 = sbr.rel (%p198) target = $region20
        $region19: #{tpu_custom_call.1} parent=11 // pred_region
          _
        $region20: #{tpu_custom_call.1} parent=11 // pred_fallthru
          _
      $region12: #{tpu_custom_call.1} parent=5 // pred_fallthru
        _
      %p201 = scmp.lt.s32.totalorder %s14, 4
      // Predicated region
      $region21: #{tpu_custom_call.1} parent=5 // pred_check
        %p202 = pneg %p201
      $region22: #{tpu_custom_call.1} parent=5 // pred_check_branch
        %204 = sbr.rel (%p202) target = $region24
      $region23: #{tpu_custom_call.1} parent=5 // pred_region
        // Predicated region
        $region25: #{tpu_custom_call.1} parent=23 // pred_check
          %p205 = pneg %p48
        $region26: #{tpu_custom_call.1} parent=23 // pred_check_branch
          %207 = sbr.rel (%p205) target = $region28
        $region27: #{tpu_custom_call.1} parent=23 // pred_region
          %p208 = scmp.lt.s32.totalorder %s21, 1
          %s209 = scalar_select %p208, %s21, 1
          %p210 = scmp.lt.s32.totalorder %s22, 1
          %s211 = scalar_select %p210, %s22, 1
          %s212 = smul.addr %s209, 2
          %s213 = sadd.s32 %s211, %s212
          %s214 = smul.addr %s213, 8
          %s215 = scalar_lea.vmem %s0, %s214
        $region28: #{tpu_custom_call.1} parent=23 // pred_fallthru
          _
        // Predicated region
        $region29: #{tpu_custom_call.1} parent=23 // pred_check
          %p216 = pneg %p76
        $region30: #{tpu_custom_call.1} parent=23 // pred_check_branch
          %218 = sbr.rel (%p216) target = $region32
        $region31: #{tpu_custom_call.1} parent=23 // pred_region
          %p219 = scmp.lt.s32.totalorder %s21, 1
          %s220 = scalar_select %p219, %s21, 1
          %p221 = scmp.lt.s32.totalorder %s22, 1
          %s222 = scalar_select %p221, %s22, 1
          %s223 = smul.addr %s220, 2
          %s224 = sadd.s32 %s222, %s223
          %s225 = smul.addr %s224, 8
          %s226 = scalar_lea.vmem %s1, %s225
        $region32: #{tpu_custom_call.1} parent=23 // pred_fallthru
          _
        // Predicated region
        $region33: #{tpu_custom_call.1} parent=23 // pred_check
          %p227 = pneg %p104
        $region34: #{tpu_custom_call.1} parent=23 // pred_check_branch
          %229 = sbr.rel (%p227) target = $region36
        $region35: #{tpu_custom_call.1} parent=23 // pred_region
          %p230 = scmp.lt.s32.totalorder %s21, 1
          %s231 = scalar_select %p230, %s21, 1
          %p232 = scmp.lt.s32.totalorder %s22, 1
          %s233 = scalar_select %p232, %s22, 1
          %s234 = smul.addr %s231, 2
          %s235 = sadd.s32 %s233, %s234
          %s236 = smul.addr %s235, 8
          %s237 = scalar_lea.vmem %s2, %s236
        $region36: #{tpu_custom_call.1} parent=23 // pred_fallthru
          _
      $region24: #{tpu_custom_call.1} parent=5 // pred_fallthru
        _
      %p238 = scmp.le.s32.totalorder 1, %s14
      %p239 = scmp.lt.s32.totalorder %s14, 5
      %p240 = pnand %p238, %p239
      %p241 = pneg %p240
      // Predicated region
      $region37: #{tpu_custom_call.1} parent=5 // pred_check
        _
      $region38: #{tpu_custom_call.1} parent=5 // pred_check_branch
        %243 = sbr.rel (%p240) target = $region40
      $region39: #{tpu_custom_call.1} parent=5 // pred_region
        %s244 = ssub.s32 %s14, 1
        %p245 = scmp.lt.s32.totalorder %s23, 1
        %s246 = scalar_select %p245, %s23, 1
        %p247 = scmp.lt.s32.totalorder %s24, 1
        %s248 = scalar_select %p247, %s24, 1
        %s249 = smul.addr %s246, 2
        %s250 = sadd.s32 %s248, %s249
        %s251 = smul.addr %s250, 8
        %s252 = scalar_lea.vmem %s0, %s251
        %p253 = pneg %p54
        %p254 = pneg %p51
        %p255 = scmp.lt.s32.totalorder %s23, 1
        %s256 = scalar_select %p255, %s23, 1
        %p257 = scmp.lt.s32.totalorder %s24, 1
        %s258 = scalar_select %p257, %s24, 1
        %s259 = smul.addr %s256, 2
        %s260 = sadd.s32 %s258, %s259
        %s261 = smul.addr %s260, 8
        %s262 = scalar_lea.vmem %s1, %s261
        %p263 = pneg %p82
        %p264 = pneg %p79
        %p265 = scmp.lt.s32.totalorder %s23, 1
        %s266 = scalar_select %p265, %s23, 1
        %p267 = scmp.lt.s32.totalorder %s24, 1
        %s268 = scalar_select %p267, %s24, 1
        %s269 = smul.addr %s266, 2
        %s270 = sadd.s32 %s268, %s269
        %s271 = smul.addr %s270, 8
        %s272 = scalar_lea.vmem %s2, %s271
        %p273 = pneg %p110
        %p274 = pneg %p107
        %p275 = pneg %p131
        %p276 = pneg %p128
        %p277 = pneg %p152
        %p278 = pneg %p149
        %p279 = pneg %p180
        %p280 = pneg %p177
        %s281 = sand.u32 %s167, 1
        %s282 = scalar_lea.sflag [#allocation3], %s281
        %s283 = sand.u32 %s167, 1
        %s284 = smul.addr %s283, 16
        %s285 = scalar_lea.vmem [#allocation2], %s284
        %p286 = scmp.lt.s32.totalorder %s23, 1
        %s287 = scalar_select %p286, %s23, 1
        %p288 = scmp.lt.s32.totalorder %s24, 1
        %s289 = scalar_select %p288, %s24, 1
        %s290 = smul.addr %s287, 2
        %s291 = sadd.s32 %s289, %s290
        %s292 = smul.addr %s291, 8
        %s293 = scalar_lea.vmem %s0, %s292
        %p294 = scmp.lt.s32.totalorder %s23, 1
        %s295 = scalar_select %p294, %s23, 1
        %p296 = scmp.lt.s32.totalorder %s24, 1
        %s297 = scalar_select %p296, %s24, 1
        %s298 = smul.addr %s295, 2
        %s299 = sadd.s32 %s297, %s298
        %s300 = smul.addr %s299, 8
        %s301 = scalar_lea.vmem %s1, %s300
        %p302 = scmp.lt.s32.totalorder %s23, 1
        %s303 = scalar_select %p302, %s23, 1
        %p304 = scmp.lt.s32.totalorder %s24, 1
        %s305 = scalar_select %p304, %s24, 1
        %s306 = smul.addr %s303, 2
        %s307 = sadd.s32 %s305, %s306
        %s308 = smul.addr %s307, 8
        %s309 = scalar_lea.vmem %s2, %s308
        %v310 = vld [vmem:[%s293] sm:$0xff]
        %v311 = vld [vmem:[%s301] sm:$0xff]
        %v312 = vld [vmem:[%s309] sm:$0xff]
        %v313 = vlaneseq
        %v314 = vand.u32 %v313, 127
        %vm315 = vcmp.eq.s32.totalorder %v314, 0
        %316 = vrot.lane.b32.xlu0 %v310, 1
        %v317 = vpop.permute.xlu0 %316
        %319 = vset.pattern.permute.xlu0 0
        %320 = vperm.xlu0 %319, %v311
        %v321 = vpop.permute.xlu0 %320
        %v323 = vsel %vm315, %v321, %v317
        %vm324 = vcmp.eq.s32.totalorder %v314, 127
        %325 = vrot.lane.b32.xlu0 %v310, 127
        %v326 = vpop.permute.xlu0 %325
        %328 = vset.pattern.permute.xlu0 0
        %329 = vperm.xlu0 %328, %v312
        %v330 = vpop.permute.xlu0 %329
        %v332 = vsel %vm324, %v330, %v326
        %v333 = vld [vmem:[%s3] sm:$0xff]
        %v334 = vld [vmem:[%s3 + $0x8] sm:$0xff]
        %v335 = vld [vmem:[%s3 + $0x10] sm:$0xff]
        %v336 = vld [vmem:[%s3 + $0x18] sm:$0xff]
        %s337 = scalar_lea.vmem %s3, 32
        %v338 = vld [vmem:[%s337] sm:$0xff]
        %v339 = vld [vmem:[%s337 + $0x8] sm:$0xff]
        %v340 = vld [vmem:[%s337 + $0x10] sm:$0xff]
        %v341 = vld [vmem:[%s337 + $0x18] sm:$0xff]
        %vm342 = vcmask 64512
        %v344 = vsel %vm342, %v338, 0
        %v347 = vsel %vm342, %v339, 0
        %v350 = vsel %vm342, %v340, 0
        %v353 = vsel %vm342, %v341, 0
        %355 = vmatprep.subr.mxu0 0.0
        %356 = vmatpush1.msra.mxu0 0.0
        %357 = vmatprep.subr.mxu0 0.0
        %358 = vmatpush1.msra.mxu0 0.0
        %359 = vmatprep.subr.mxu0 0.0
        %360 = vmatpush1.msra.mxu0 0.0
        %361 = vmatprep.subr.mxu0 0.0
        %362 = vmatpush1.msra.mxu0 0.0
        %363 = vmatprep.subr.mxu0 0.0
        %364 = vmatpush1.msra.mxu0 0.0
        %365 = vmatprep.subr.mxu0 0.0
        %366 = vmatpush1.msra.mxu0 0.0
        %367 = vmatprep.subr.mxu0 0.0
        %368 = vmatpush1.msra.mxu0 0.0
        %369 = vmatprep.subr.mxu0 0.0
        %370 = vmatpush1.msra.mxu0 0.0
        %371 = vmatprep.subr.mxu0 0.0
        %372 = vmatpush1.msra.mxu0 0.0
        %373 = vmatprep.subr.mxu0 0.0
        %374 = vmatpush1.msra.mxu0 0.0
        %375 = vmatprep.subr.mxu0 0.0
        %376 = vmatpush1.msra.mxu0 0.0
        %377 = vmatprep.subr.mxu0 0.0
        %378 = vmatpush1.msra.mxu0 0.0
        %379 = vmatprep.subr.mxu0 0.0
        %380 = vmatpush1.msra.mxu0 0.0
        %381 = vmatprep.subr.mxu0 0.0
        %382 = vmatpush1.msra.mxu0 0.0
        %383 = vmatprep.subr.mxu0 0.0
        %384 = vmatpush1.msra.mxu0 0.0
        %385 = vmatprep.subr.mxu0 0.0
        %386 = vmatpush1.msra.mxu0 %v310
        %387 = vmatprep.subr.mxu0 0.0
        %388 = vmatpush2.msra.mxu0 0.0
        %389 = vmatprep.subr.mxu0 0.0
        %390 = vmatpush2.msra.mxu0 0.0
        %391 = vmatprep.subr.mxu0 0.0
        %392 = vmatpush2.msra.mxu0 0.0
        %393 = vmatprep.subr.mxu0 0.0
        %394 = vmatpush2.msra.mxu0 0.0
        %395 = vmatprep.subr.mxu0 0.0
        %396 = vmatpush2.msra.mxu0 0.0
        %397 = vmatprep.subr.mxu0 0.0
        %398 = vmatpush2.msra.mxu0 0.0
        %399 = vmatprep.subr.mxu0 0.0
        %400 = vmatpush2.msra.mxu0 0.0
        %401 = vmatprep.subr.mxu0 0.0
        %402 = vmatpush2.msra.mxu0 0.0
        %403 = vmatprep.subr.mxu0 0.0
        %404 = vmatpush2.msra.mxu0 0.0
        %405 = vmatprep.subr.mxu0 0.0
        %406 = vmatpush2.msra.mxu0 0.0
        %407 = vmatprep.subr.mxu0 0.0
        %408 = vmatpush2.msra.mxu0 0.0
        %409 = vmatprep.subr.mxu0 0.0
        %410 = vmatpush2.msra.mxu0 0.0
        %411 = vmatprep.subr.mxu0 0.0
        %412 = vmatpush2.msra.mxu0 0.0
        %413 = vmatprep.subr.mxu0 0.0
        %414 = vmatpush2.msra.mxu0 0.0
        %415 = vmatprep.subr.mxu0 0.0
        %416 = vmatpush2.msra.mxu0 0.0
        %417 = vmatprep.subr.mxu0 0.0
        %418 = vmatpush2.msra.mxu0 0.0
        %419 = vmatprep.mubr.f32.mxu0 0.0
        %420 = vmatmul.mubr.f32.gmra.mxu0 %v344
        %v421 = vpop.f32.mrf.mxu0
        %v422 = vadd.f32 0.0, %v421
        %v423 = vpop.f32.mrf.mxu0
        %424 = vmatprep.mubr.f32.mxu0 0.0
        %425 = vmatmul.mubr.f32.gmra.mxu0 %v347
        %v426 = vpop.f32.mrf.mxu0
        %v427 = vadd.f32 0.0, %v426
        %v428 = vpop.f32.mrf.mxu0
        %429 = vmatprep.mubr.f32.mxu0 0.0
        %430 = vmatmul.mubr.f32.gmra.mxu0 %v350
        %v431 = vpop.f32.mrf.mxu0
        %v432 = vadd.f32 0.0, %v431
        %v433 = vpop.f32.mrf.mxu0
        %434 = vmatprep.mubr.f32.mxu0 0.0
        %435 = vmatmul.mubr.f32.gmra.mxu0 %v353
        %v436 = vpop.f32.mrf.mxu0
        %v437 = vadd.f32 0.0, %v436
        %v438 = vpop.f32.mrf.mxu0
        %439 = vdwg.mxu0
        %v441 = vsel %vm342, %v333, 0
        %v444 = vsel %vm342, %v334, 0
        %v447 = vsel %vm342, %v335, 0
        %v450 = vsel %vm342, %v336, 0
        %452 = vmatprep.subr.mxu0 0.0
        %453 = vmatpush1.msra.mxu0 0.0
        %454 = vmatprep.subr.mxu0 0.0
        %455 = vmatpush1.msra.mxu0 0.0
        %456 = vmatprep.subr.mxu0 0.0
        %457 = vmatpush1.msra.mxu0 0.0
        %458 = vmatprep.subr.mxu0 0.0
        %459 = vmatpush1.msra.mxu0 0.0
        %460 = vmatprep.subr.mxu0 0.0
        %461 = vmatpush1.msra.mxu0 0.0
        %462 = vmatprep.subr.mxu0 0.0
        %463 = vmatpush1.msra.mxu0 0.0
        %464 = vmatprep.subr.mxu0 0.0
        %465 = vmatpush1.msra.mxu0 0.0
        %466 = vmatprep.subr.mxu0 0.0
        %467 = vmatpush1.msra.mxu0 0.0
        %468 = vmatprep.subr.mxu0 0.0
        %469 = vmatpush1.msra.mxu0 0.0
        %470 = vmatprep.subr.mxu0 0.0
        %471 = vmatpush1.msra.mxu0 0.0
        %472 = vmatprep.subr.mxu0 0.0
        %473 = vmatpush1.msra.mxu0 0.0
        %474 = vmatprep.subr.mxu0 0.0
        %475 = vmatpush1.msra.mxu0 0.0
        %476 = vmatprep.subr.mxu0 0.0
        %477 = vmatpush1.msra.mxu0 0.0
        %478 = vmatprep.subr.mxu0 0.0
        %479 = vmatpush1.msra.mxu0 0.0
        %480 = vmatprep.subr.mxu0 0.0
        %481 = vmatpush1.msra.mxu0 0.0
        %482 = vmatprep.subr.mxu0 0.0
        %483 = vmatpush1.msra.mxu0 %v323
        %484 = vmatprep.subr.mxu0 0.0
        %485 = vmatpush2.msra.mxu0 0.0
        %486 = vmatprep.subr.mxu0 0.0
        %487 = vmatpush2.msra.mxu0 0.0
        %488 = vmatprep.subr.mxu0 0.0
        %489 = vmatpush2.msra.mxu0 0.0
        %490 = vmatprep.subr.mxu0 0.0
        %491 = vmatpush2.msra.mxu0 0.0
        %492 = vmatprep.subr.mxu0 0.0
        %493 = vmatpush2.msra.mxu0 0.0
        %494 = vmatprep.subr.mxu0 0.0
        %495 = vmatpush2.msra.mxu0 0.0
        %496 = vmatprep.subr.mxu0 0.0
        %497 = vmatpush2.msra.mxu0 0.0
        %498 = vmatprep.subr.mxu0 0.0
        %499 = vmatpush2.msra.mxu0 0.0
        %500 = vmatprep.subr.mxu0 0.0
        %501 = vmatpush2.msra.mxu0 0.0
        %502 = vmatprep.subr.mxu0 0.0
        %503 = vmatpush2.msra.mxu0 0.0
        %504 = vmatprep.subr.mxu0 0.0
        %505 = vmatpush2.msra.mxu0 0.0
        %506 = vmatprep.subr.mxu0 0.0
        %507 = vmatpush2.msra.mxu0 0.0
        %508 = vmatprep.subr.mxu0 0.0
        %509 = vmatpush2.msra.mxu0 0.0
        %510 = vmatprep.subr.mxu0 0.0
        %511 = vmatpush2.msra.mxu0 0.0
        %512 = vmatprep.subr.mxu0 0.0
        %513 = vmatpush2.msra.mxu0 0.0
        %514 = vmatprep.subr.mxu0 0.0
        %515 = vmatpush2.msra.mxu0 0.0
        %516 = vmatprep.mubr.f32.mxu0 0.0
        %517 = vmatmul.mubr.f32.gmra.mxu0 %v441
        %v518 = vpop.f32.mrf.mxu0
        %v519 = vadd.f32 %v422, %v518
        %v520 = vpop.f32.mrf.mxu0
        %521 = vmatprep.mubr.f32.mxu0 0.0
        %522 = vmatmul.mubr.f32.gmra.mxu0 %v444
        %v523 = vpop.f32.mrf.mxu0
        %v524 = vadd.f32 %v427, %v523
        %v525 = vpop.f32.mrf.mxu0
        %526 = vmatprep.mubr.f32.mxu0 0.0
        %527 = vmatmul.mubr.f32.gmra.mxu0 %v447
        %v528 = vpop.f32.mrf.mxu0
        %v529 = vadd.f32 %v432, %v528
        %v530 = vpop.f32.mrf.mxu0
        %531 = vmatprep.mubr.f32.mxu0 0.0
        %532 = vmatmul.mubr.f32.gmra.mxu0 %v450
        %v533 = vpop.f32.mrf.mxu0
        %v534 = vadd.f32 %v437, %v533
        %v535 = vpop.f32.mrf.mxu0
        %536 = vdwg.mxu0
        %s537 = scalar_lea.vmem %s3, 64
        %v538 = vld [vmem:[%s537] sm:$0xff]
        %v539 = vld [vmem:[%s537 + $0x8] sm:$0xff]
        %v540 = vld [vmem:[%s537 + $0x10] sm:$0xff]
        %v541 = vld [vmem:[%s537 + $0x18] sm:$0xff]
        %v543 = vsel %vm342, %v538, 0
        %v546 = vsel %vm342, %v539, 0
        %v549 = vsel %vm342, %v540, 0
        %v552 = vsel %vm342, %v541, 0
        %554 = vmatprep.subr.mxu0 0.0
        %555 = vmatpush1.msra.mxu0 0.0
        %556 = vmatprep.subr.mxu0 0.0
        %557 = vmatpush1.msra.mxu0 0.0
        %558 = vmatprep.subr.mxu0 0.0
        %559 = vmatpush1.msra.mxu0 0.0
        %560 = vmatprep.subr.mxu0 0.0
        %561 = vmatpush1.msra.mxu0 0.0
        %562 = vmatprep.subr.mxu0 0.0
        %563 = vmatpush1.msra.mxu0 0.0
        %564 = vmatprep.subr.mxu0 0.0
        %565 = vmatpush1.msra.mxu0 0.0
        %566 = vmatprep.subr.mxu0 0.0
        %567 = vmatpush1.msra.mxu0 0.0
        %568 = vmatprep.subr.mxu0 0.0
        %569 = vmatpush1.msra.mxu0 0.0
        %570 = vmatprep.subr.mxu0 0.0
        %571 = vmatpush1.msra.mxu0 0.0
        %572 = vmatprep.subr.mxu0 0.0
        %573 = vmatpush1.msra.mxu0 0.0
        %574 = vmatprep.subr.mxu0 0.0
        %575 = vmatpush1.msra.mxu0 0.0
        %576 = vmatprep.subr.mxu0 0.0
        %577 = vmatpush1.msra.mxu0 0.0
        %578 = vmatprep.subr.mxu0 0.0
        %579 = vmatpush1.msra.mxu0 0.0
        %580 = vmatprep.subr.mxu0 0.0
        %581 = vmatpush1.msra.mxu0 0.0
        %582 = vmatprep.subr.mxu0 0.0
        %583 = vmatpush1.msra.mxu0 0.0
        %584 = vmatprep.subr.mxu0 0.0
        %585 = vmatpush1.msra.mxu0 %v332
        %586 = vmatprep.subr.mxu0 0.0
        %587 = vmatpush2.msra.mxu0 0.0
        %588 = vmatprep.subr.mxu0 0.0
        %589 = vmatpush2.msra.mxu0 0.0
        %590 = vmatprep.subr.mxu0 0.0
        %591 = vmatpush2.msra.mxu0 0.0
        %592 = vmatprep.subr.mxu0 0.0
        %593 = vmatpush2.msra.mxu0 0.0
        %594 = vmatprep.subr.mxu0 0.0
        %595 = vmatpush2.msra.mxu0 0.0
        %596 = vmatprep.subr.mxu0 0.0
        %597 = vmatpush2.msra.mxu0 0.0
        %598 = vmatprep.subr.mxu0 0.0
        %599 = vmatpush2.msra.mxu0 0.0
        %600 = vmatprep.subr.mxu0 0.0
        %601 = vmatpush2.msra.mxu0 0.0
        %602 = vmatprep.subr.mxu0 0.0
        %603 = vmatpush2.msra.mxu0 0.0
        %604 = vmatprep.subr.mxu0 0.0
        %605 = vmatpush2.msra.mxu0 0.0
        %606 = vmatprep.subr.mxu0 0.0
        %607 = vmatpush2.msra.mxu0 0.0
        %608 = vmatprep.subr.mxu0 0.0
        %609 = vmatpush2.msra.mxu0 0.0
        %610 = vmatprep.subr.mxu0 0.0
        %611 = vmatpush2.msra.mxu0 0.0
        %612 = vmatprep.subr.mxu0 0.0
        %613 = vmatpush2.msra.mxu0 0.0
        %614 = vmatprep.subr.mxu0 0.0
        %615 = vmatpush2.msra.mxu0 0.0
        %616 = vmatprep.subr.mxu0 0.0
        %617 = vmatpush2.msra.mxu0 0.0
        %618 = vmatprep.mubr.f32.mxu0 0.0
        %619 = vmatmul.mubr.f32.gmra.mxu0 %v543
        %v620 = vpop.f32.mrf.mxu0
        %v621 = vadd.f32 0.0, %v620
        %v622 = vpop.f32.mrf.mxu0
        %623 = vmatprep.mubr.f32.mxu0 0.0
        %624 = vmatmul.mubr.f32.gmra.mxu0 %v546
        %v625 = vpop.f32.mrf.mxu0
        %v626 = vadd.f32 0.0, %v625
        %v627 = vpop.f32.mrf.mxu0
        %628 = vmatprep.mubr.f32.mxu0 0.0
        %629 = vmatmul.mubr.f32.gmra.mxu0 %v549
        %v630 = vpop.f32.mrf.mxu0
        %v631 = vadd.f32 0.0, %v630
        %v632 = vpop.f32.mrf.mxu0
        %633 = vmatprep.mubr.f32.mxu0 0.0
        %634 = vmatmul.mubr.f32.gmra.mxu0 %v552
        %v635 = vpop.f32.mrf.mxu0
        %v636 = vadd.f32 0.0, %v635
        %v637 = vpop.f32.mrf.mxu0
        %638 = vdwg.mxu0
        %v639 = vadd.f32 %v519, %v621
        %v640 = vadd.f32 %v524, %v626
        %v641 = vadd.f32 %v529, %v631
        %v642 = vadd.f32 %v534, %v636
        %v643 = vld [vmem:[%s4] sm:$0xff]
        %v644 = vld [vmem:[%s4 + $0x8] sm:$0xff]
        %v645 = vld [vmem:[%s4 + $0x10] sm:$0xff]
        %v646 = vld [vmem:[%s4 + $0x18] sm:$0xff]
        %648 = vset.pattern.permute.xlu0 0
        %649 = vperm.xlu0 %648, %v643
        %v650 = vpop.permute.xlu0 %649
        %653 = vset.pattern.permute.xlu0 0
        %654 = vperm.xlu0 %653, %v644
        %v655 = vpop.permute.xlu0 %654
        %658 = vset.pattern.permute.xlu0 0
        %659 = vperm.xlu0 %658, %v645
        %v660 = vpop.permute.xlu0 %659
        %663 = vset.pattern.permute.xlu0 0
        %664 = vperm.xlu0 %663, %v646
        %v665 = vpop.permute.xlu0 %664
        %v667 = vadd.f32 %v639, %v650
        %v668 = vadd.f32 %v640, %v655
        %v669 = vadd.f32 %v641, %v660
        %v670 = vadd.f32 %v642, %v665
        %v671 = vxor.u32 %v669, 2147483648
        %v672 = vxor.u32 %v670, 2147483648
        %v673 = vmul.f32 %v671, 1.442695
        %v674 = vpow.pop %v673
        %v675 = vmul.f32 %v672, 1.442695
        %v676 = vpow.pop %v675
        %v677 = vadd.f32 %v674, 1.0
        %v678 = vadd.f32 %v676, 1.0
        %v679 = vrcp.pop %v677
        %v680 = vmul.f32 1.0, %v679
        %v681 = vrcp.pop %v678
        %v682 = vmul.f32 1.0, %v681
        %v683 = vmul.f32 %v667, %v680
        %v684 = vmul.f32 %v668, %v682
        %685 = vst [vmem:[%s285] sm:$0xff] %v683
        %686 = vst [vmem:[%s285 + $0x8] sm:$0xff] %v684
        %s687 = sand.u32 %s167, 1
        %s688 = scalar_lea.sflag [#allocation3], %s687
        %s689 = sand.u32 %s167, 1
        %s690 = smul.addr %s689, 16
        %s691 = scalar_lea.vmem [#allocation2], %s690
        // Predicated region
        $region41: #{tpu_custom_call.1} parent=39 // pred_check
          %p692 = pneg %p177
        $region42: #{tpu_custom_call.1} parent=39 // pred_check_branch
          %694 = sbr.rel (%p692) target = $region44
        $region43: #{tpu_custom_call.1} parent=39 // pred_region
          %s696 = ssub.s32 256, 256
          %697 = vsyncadd %s688, %s696
          %s698 = smul.addr %s23, 4
          %s699 = sadd.s32 %s24, %s698
          %s700 = smul.addr %s699, 128
          %s701 = scalar_lea.hbm %s5, %s700
          %s702 = sshll.u32 %s691, 4
          %s703 = int_to_ptr.vmem [resolvable:$true] %s702
          %708 = dma.vmem_to_hbm [thread:$0]  %s703, 256, %s701, %s688, 128, 256, 8
        $region44: #{tpu_custom_call.1} parent=39 // pred_fallthru
          _
      $region40: #{tpu_custom_call.1} parent=5 // pred_fallthru
        _
      %p709 = scmp.le.s32.totalorder 2, %s14
      // Predicated region
      $region45: #{tpu_custom_call.1} parent=5 // pred_check
        %p710 = pneg %p709
      $region46: #{tpu_custom_call.1} parent=5 // pred_check_branch
        %712 = sbr.rel (%p710) target = $region48
      $region47: #{tpu_custom_call.1} parent=5 // pred_region
        %s713 = ssub.s32 %s14, 2
        // Predicated region
        $region49: #{tpu_custom_call.1} parent=47 // pred_check
          %p714 = pneg %p183
        $region50: #{tpu_custom_call.1} parent=47 // pred_check_branch
          %716 = sbr.rel (%p714) target = $region52
        $region51: #{tpu_custom_call.1} parent=47 // pred_region
          %s717 = sand.u32 %s168, 1
          %s718 = scalar_lea.sflag [#allocation3], %s717
          %s719 = sand.u32 %s168, 1
          %s720 = smul.addr %s719, 16
          %s721 = scalar_lea.vmem [#allocation2], %s720
          %722 = dma.done %s718, 256
        $region52: #{tpu_custom_call.1} parent=47 // pred_fallthru
          _
      $region48: #{tpu_custom_call.1} parent=5 // pred_fallthru
        _
    $region6: #{tpu_custom_call.1} parent=1 // loop_footer
      %s18 = sadd.s32 1, %s14
    $region7: #{tpu_custom_call.1} parent=1 // loop_footer_branch
      %13 = sbr.rel target = $region3
    $region8: #{tpu_custom_call.1} parent=1 // loop_exit
      _
    %723 = vsyncpa [#allocation3], 1
    %s724 = scalar_lea.sflag [#allocation3], 1
    %725 = vsyncpa %s724, 1

</llo_original>
